<compile_context>
chip_gen: v7x
topology: tpu7x:2x2x1
jax: 0.10.0
libtpu: 0.0.40
codegen_flags: <defaults>
</compile_context>

<pallas_src>
import functools

import jax
import jax.numpy as jnp
from jax import lax
from jax.experimental import pallas as pl
from jax.experimental.pallas import tpu as pltpu

_NEG = -1e30  # large-negative mask value (avoids -inf arithmetic edge cases)


def _round_up(x, m):
    return (x + m - 1) // m * m


def _pad_rows(x, rows):
    pad = rows - x.shape[0]
    if pad:
        x = jnp.pad(x, ((0, pad), (0, 0)))
    return x


# ----------------------------------------------------------------------------
# Kernel 1: negative_keys is None
#   logits = (Q @ P^T) / T, labels = arange(N)
#   online logsumexp over key tiles; target_i = (q_i . p_i) / T
# ----------------------------------------------------------------------------
def _infonce_self_kernel(q_ref, k_ref, pos_ref, out_ref, m_sc, l_sc, *,
                         inv_t, n_rows, n_keys, block_q, block_k,
                         need_row_mask, need_col_mask):
    i = pl.program_id(0)
    k = pl.program_id(1)

    @pl.when(k == 0)
    def _():
        m_sc[...] = jnp.full_like(m_sc, _NEG)
        l_sc[...] = jnp.zeros_like(l_sc)

    q = q_ref[...] * inv_t                                   # (TM, D), 1/T folded in
    keys = k_ref[...]                                        # (TK, D)
    # contract on D for both operands -> no transpose materialized
    s = lax.dot_general(q, keys, (((1,), (1,)), ((), ())),
                        preferred_element_type=jnp.float32)  # (TM, TK)

    if need_col_mask:
        col = lax.broadcasted_iota(jnp.int32, s.shape, 1) + k * block_k
        s = jnp.where(col < n_keys, s, _NEG)

    m_prev = m_sc[...]
    m_new = jnp.maximum(m_prev, jnp.max(s, axis=-1, keepdims=True))
    alpha = jnp.exp(m_prev - m_new)
    p = jnp.exp(s - m_new)
    l_sc[...] = alpha * l_sc[...] + jnp.sum(p, axis=-1, keepdims=True)
    m_sc[...] = m_new

    @pl.when(k == pl.num_programs(1) - 1)
    def _():
        # per-row target logit (already scaled by 1/T through q)
        target = jnp.sum(q * pos_ref[...], axis=-1, keepdims=True)   # (TM, 1)
        loss = m_sc[...] + jnp.log(l_sc[...]) - target                # (TM, 1)
        if need_row_mask:
            row = lax.broadcasted_iota(jnp.int32, loss.shape, 0) + i * block_q
            loss = jnp.where(row < n_rows, loss, 0.0)
        out_ref[...] = jnp.full(out_ref.shape, jnp.sum(loss), dtype=jnp.float32)


# ----------------------------------------------------------------------------
# Kernel 2: 'unpaired' negative keys
#   pos_i = (q_i . p_i)/T,  neg = (Q/T) @ Neg^T,  labels = 0
#   online logsumexp seeded with pos (no concatenate / column slice)
# ----------------------------------------------------------------------------
def _infonce_unpaired_kernel(q_ref, p_ref, nk_ref, out_ref, m_sc, l_sc, pos_sc, *,
                             inv_t, n_rows, n_keys, block_q, block_k,
                             need_row_mask, need_col_mask):
    i = pl.program_id(0)
    k = pl.program_id(1)

    q = q_ref[...] * inv_t                                   # (TM, D), 1/T folded in

    @pl.when(k == 0)
    def _():
        pos = jnp.sum(q * p_ref[...], axis=-1, keepdims=True)  # (TM, 1), scaled
        pos_sc[...] = pos
        m_sc[...] = pos                # seed logsumexp with the label-0 logit
        l_sc[...] = jnp.ones_like(l_sc)

    keys = nk_ref[...]                                       # (TK, D)
    s = lax.dot_general(q, keys, (((1,), (1,)), ((), ())),
                        preferred_element_type=jnp.float32)  # (TM, TK)

    if need_col_mask:
        col = lax.broadcasted_iota(jnp.int32, s.shape, 1) + k * block_k
        s = jnp.where(col < n_keys, s, _NEG)

    m_prev = m_sc[...]
    m_new = jnp.maximum(m_prev, jnp.max(s, axis=-1, keepdims=True))
    alpha = jnp.exp(m_prev - m_new)
    p = jnp.exp(s - m_new)
    l_sc[...] = alpha * l_sc[...] + jnp.sum(p, axis=-1, keepdims=True)
    m_sc[...] = m_new

    @pl.when(k == pl.num_programs(1) - 1)
    def _():
        loss = m_sc[...] + jnp.log(l_sc[...]) - pos_sc[...]           # (TM, 1)
        if need_row_mask:
            row = lax.broadcasted_iota(jnp.int32, loss.shape, 0) + i * block_q
            loss = jnp.where(row < n_rows, loss, 0.0)
        out_ref[...] = jnp.full(out_ref.shape, jnp.sum(loss), dtype=jnp.float32)


# ----------------------------------------------------------------------------
# Wrapper (mirrors InfoNCE.forward with reduction='mean')
# ----------------------------------------------------------------------------
def info_nce_pallas(query, positive_key, negative_keys=None,
                    temperature=0.1, negative_mode='unpaired',
                    block_q=128, block_k=512):
    query = jnp.asarray(query, jnp.float32)
    positive_key = jnp.asarray(positive_key, jnp.float32)
    if query.ndim != 2 or positive_key.ndim != 2:
        raise ValueError("query/positive_key must be 2-D")
    if query.shape != positive_key.shape:
        raise ValueError("query and positive_key must have the same shape")
    # TODO(synk): negative_mode='paired' (3-D negative_keys) and
    #             reduction in {'none','sum'} not wired up; defaults only.

    n, d = query.shape
    inv_t = float(1.0 / temperature)

    # row tiling over queries
    tm = min(block_q, _round_up(n, 8))
    n_pad = _round_up(n, tm)
    r = n_pad // tm
    q_p = _pad_rows(query, n_pad)
    pos_p = _pad_rows(positive_key, n_pad)

    out_shape = jax.ShapeDtypeStruct((r, 1, 128), jnp.float32)
    out_spec = pl.BlockSpec((1, 1, 128), lambda i, k: (i, 0, 0))
    cparams = pltpu.CompilerParams(
        dimension_semantics=("parallel", "arbitrary"))

    if negative_keys is None:
        # keys are the positive keys of the whole batch
        n_keys = n
        tk = min(block_k, _round_up(n_keys, 128))
        keys_pad = _round_up(n_keys, tk)
        kt = keys_pad // tk
        keys_p = _pad_rows(positive_key, keys_pad)

        kernel = functools.partial(
            _infonce_self_kernel, inv_t=inv_t, n_rows=n, n_keys=n_keys,
            block_q=tm, block_k=tk,
            need_row_mask=(n_pad != n), need_col_mask=(keys_pad != n_keys))

        partial = pl.pallas_call(
            kernel,
            out_shape=out_shape,
            grid=(r, kt),
            in_specs=[
                pl.BlockSpec((tm, d), lambda i, k: (i, 0)),   # Q row block
                pl.BlockSpec((tk, d), lambda i, k: (k, 0)),   # P key block
                pl.BlockSpec((tm, d), lambda i, k: (i, 0)),   # P row block (targets)
            ],
            out_specs=out_spec,
            scratch_shapes=[pltpu.VMEM((tm, 1), jnp.float32),   # m
                            pltpu.VMEM((tm, 1), jnp.float32)],  # l
            compiler_params=cparams,
        )(q_p, keys_p, pos_p)
    else:
        if negative_mode != 'unpaired' or negative_keys.ndim != 2:
            raise ValueError("only 2-D 'unpaired' negative_keys supported")
        negative_keys = jnp.asarray(negative_keys, jnp.float32)
        if negative_keys.shape[-1] != d:
            raise ValueError("negative_keys feature dim mismatch")

        n_keys = negative_keys.shape[0]
        tk = min(block_k, _round_up(n_keys, 128))
        keys_pad = _round_up(n_keys, tk)
        kt = keys_pad // tk
        neg_p = _pad_rows(negative_keys, keys_pad)

        kernel = functools.partial(
            _infonce_unpaired_kernel, inv_t=inv_t, n_rows=n, n_keys=n_keys,
            block_q=tm, block_k=tk,
            need_row_mask=(n_pad != n), need_col_mask=(keys_pad != n_keys))

        partial = pl.pallas_call(
            kernel,
            out_shape=out_shape,
            grid=(r, kt),
            in_specs=[
                pl.BlockSpec((tm, d), lambda i, k: (i, 0)),   # Q row block
                pl.BlockSpec((tm, d), lambda i, k: (i, 0)),   # positive-key row block
                pl.BlockSpec((tk, d), lambda i, k: (k, 0)),   # negative-key block
            ],
            out_specs=out_spec,
            scratch_shapes=[pltpu.VMEM((tm, 1), jnp.float32),   # m
                            pltpu.VMEM((tm, 1), jnp.float32),   # l
                            pltpu.VMEM((tm, 1), jnp.float32)],  # pos logit
            compiler_params=cparams,
        )(q_p, pos_p, neg_p)

    # lane-dense per-row-block partial sums -> mean over valid rows
    return jnp.sum(partial[:, 0, 0]) / n


# ----------------------------------------------------------------------------
# Pure-JAX reference (same math as the PyTorch module)
# ----------------------------------------------------------------------------
def info_nce_ref(query, positive_key, negative_keys=None, temperature=0.1):
    if negative_keys is None:
        logits = query @ positive_key.T
        labels = jnp.arange(query.shape[0])
    else:
        pos = jnp.sum(query * positive_key, axis=1, keepdims=True)
        neg = query @ negative_keys.T
        logits = jnp.concatenate([pos, neg], axis=1)
        labels = jnp.zeros(query.shape[0], dtype=jnp.int32)
    logits = logits / temperature
    logp = jax.nn.log_softmax(logits, axis=-1)
    return -jnp.mean(jnp.take_along_axis(logp, labels[:, None], axis=1))


if __name__ == "__main__":
    key = jax.random.PRNGKey(0)
    k1, k2, k3 = jax.random.split(key, 3)

    # --- small shapes consistent with the module ---------------------------
    N, M, D = 8, 16, 32
    temperature = 0.1   # InfoNCE() default

    query = jax.random.normal(k1, (N, D), dtype=jnp.float32)
    positive_key = jax.random.normal(k2, (N, D), dtype=jnp.float32)
    negative_keys = jax.random.normal(k3, (M, D), dtype=jnp.float32)

    loss_self = info_nce_pallas(query, positive_key, temperature=temperature)
    jax.block_until_ready(loss_self)
    loss_neg = info_nce_pallas(query, positive_key, negative_keys,
                               temperature=temperature)
    jax.block_until_ready(loss_neg)

    ref_self = info_nce_ref(query, positive_key, temperature=temperature)
    ref_neg = info_nce_ref(query, positive_key, negative_keys,
                           temperature=temperature)

    assert jnp.allclose(loss_self, ref_self, rtol=1e-4, atol=1e-3), (loss_self, ref_self)
    assert jnp.allclose(loss_neg, ref_neg, rtol=1e-4, atol=1e-3), (loss_neg, ref_neg)

    # --- a second case exercising padding masks and multi-tile key loop ----
    N2, M2, D2 = 100, 200, 64
    q2 = jax.random.normal(k1, (N2, D2), dtype=jnp.float32)
    p2 = jax.random.normal(k2, (N2, D2), dtype=jnp.float32)
    nk2 = jax.random.normal(k3, (M2, D2), dtype=jnp.float32)

    l2_self = info_nce_pallas(q2, p2, temperature=0.1, block_q=32, block_k=128)
    l2_neg = info_nce_pallas(q2, p2, nk2, temperature=0.1, block_q=32, block_k=128)
    jax.block_until_ready(l2_neg)

    r2_self = info_nce_ref(q2, p2, temperature=0.1)
    r2_neg = info_nce_ref(q2, p2, nk2, temperature=0.1)

    assert jnp.allclose(l2_self, r2_self, rtol=1e-4, atol=1e-3), (l2_self, r2_self)
    assert jnp.allclose(l2_neg, r2_neg, rtol=1e-4, atol=1e-3), (l2_neg, r2_neg)

    print("KERNEL_OK")
</pallas_src>

<mosaic_0001>
module attributes {stable_mosaic.version = 11 : i64} {
  func.func @_infonce_self_kernel(%arg0: i32, %arg1: i32, %arg2: memref<8x32xf32, #tpu.memory_space<vmem>>, %arg3: memref<128x32xf32, #tpu.memory_space<vmem>>, %arg4: memref<8x32xf32, #tpu.memory_space<vmem>>, %arg5: memref<1x1x128xf32, #tpu.memory_space<vmem>>, %arg6: memref<8x1xf32, #tpu.memory_space<vmem>>, %arg7: memref<8x1xf32, #tpu.memory_space<vmem>>) attributes {dimension_semantics = [#tpu.dimension_semantics<parallel>, #tpu.dimension_semantics<arbitrary>], iteration_bounds = array<i64: 1, 1>, scalar_prefetch = 0 : i64, scratch_operands = 2 : i64, tpu.core_type = #tpu.core_type<tc>, window_params = [{transform_indices = @transform_0, window_bounds = array<i64: 8, 32>}, {transform_indices = @transform_1, window_bounds = array<i64: 128, 32>}, {transform_indices = @transform_2, window_bounds = array<i64: 8, 32>}, {transform_indices = @transform_3, window_bounds = array<i64: 1, 1, 128>}]} {
    %c0_i32 = arith.constant 0 : i32
    %0 = arith.cmpi eq, %arg1, %c0_i32 : i32
    %1 = arith.extui %0 : i1 to i32
    %c0_i32_0 = arith.constant 0 : i32
    %2 = arith.cmpi ne, %1, %c0_i32_0 : i32
    scf.if %2 {
      %cst_18 = arith.constant -1.000000e+30 : f32
      %35 = vector.broadcast %cst_18 : f32 to vector<8x1xf32>
      %c0_19 = arith.constant 0 : index
      %c0_20 = arith.constant 0 : index
      %36 = vector.load %arg6[%c0_19, %c0_20] : memref<8x1xf32, #tpu.memory_space<vmem>>, vector<8x1xf32>
      tpu.vector_store %arg6[%c0_19, %c0_20], %35 {strides = array<i32>} : memref<8x1xf32, #tpu.memory_space<vmem>>, vector<8x1xf32>,
      %cst_21 = arith.constant 0.000000e+00 : f32
      %37 = vector.broadcast %cst_21 : f32 to vector<8x1xf32>
      %c0_22 = arith.constant 0 : index
      %c0_23 = arith.constant 0 : index
      %38 = vector.load %arg7[%c0_22, %c0_23] : memref<8x1xf32, #tpu.memory_space<vmem>>, vector<8x1xf32>
      tpu.vector_store %arg7[%c0_22, %c0_23], %37 {strides = array<i32>} : memref<8x1xf32, #tpu.memory_space<vmem>>, vector<8x1xf32>,
    } else {
    }
    %c0 = arith.constant 0 : index
    %c0_1 = arith.constant 0 : index
    %3 = vector.load %arg2[%c0, %c0_1] : memref<8x32xf32, #tpu.memory_space<vmem>>, vector<8x32xf32>
    %cst = arith.constant 1.000000e+01 : f32
    %4 = vector.broadcast %cst : f32 to vector<8x32xf32>
    %5 = arith.mulf %3, %4 : vector<8x32xf32>
    %c0_2 = arith.constant 0 : index
    %c0_3 = arith.constant 0 : index
    %6 = vector.load %arg3[%c0_2, %c0_3] : memref<128x32xf32, #tpu.memory_space<vmem>>, vector<128x32xf32>
    %cst_4 = arith.constant dense<0.000000e+00> : vector<8x128xf32>
    %7 = tpu.matmul %5, %6, %cst_4 {dimension_numbers = #tpu.dot_dimension_numbers<[1], [1], [0], [0], [0, 0, 1, 0], [], []>} : vector<8x32xf32>, vector<128x32xf32>, vector<8x128xf32> -> vector<8x128xf32>
    %8 = tpu.iota {dimensions = array<i32: 1>} : vector<8x128xi32>
    %c128_i32 = arith.constant 128 : i32
    %9 = arith.muli %arg1, %c128_i32 : i32
    %10 = vector.broadcast %9 : i32 to vector<8x128xi32>
    %11 = arith.addi %8, %10 : vector<8x128xi32>
    %c8_i32 = arith.constant 8 : i32
    %12 = vector.broadcast %c8_i32 : i32 to vector<8x128xi32>
    %13 = arith.cmpi slt, %11, %12 : vector<8x128xi32>
    %cst_5 = arith.constant -1.000000e+30 : f32
    %14 = vector.broadcast %cst_5 : f32 to vector<8x128xf32>
    %15 = arith.select %13, %7, %14 : vector<8x128xi1>, vector<8x128xf32>
    %c0_6 = arith.constant 0 : index
    %c0_7 = arith.constant 0 : index
    %16 = vector.load %arg6[%c0_6, %c0_7] : memref<8x1xf32, #tpu.memory_space<vmem>>, vector<8x1xf32>
    %cst_8 = arith.constant dense<0xFF800000> : vector<8xf32>
    %17 = vector.multi_reduction <maximumf>, %15, %cst_8 [1] : vector<8x128xf32> to vector<8xf32>
    %18 = vector.shape_cast %17 : vector<8xf32> to vector<8x1xf32>
    %19 = arith.maximumf %16, %18 : vector<8x1xf32>
    %20 = arith.subf %16, %19 : vector<8x1xf32>
    %21 = math.exp %20 : vector<8x1xf32>
    %22 = vector.broadcast %19 : vector<8x1xf32> to vector<8x128xf32>
    %23 = arith.subf %15, %22 : vector<8x128xf32>
    %24 = math.exp %23 : vector<8x128xf32>
    %c0_9 = arith.constant 0 : index
    %c0_10 = arith.constant 0 : index
    %25 = vector.load %arg7[%c0_9, %c0_10] : memref<8x1xf32, #tpu.memory_space<vmem>>, vector<8x1xf32>
    %26 = arith.mulf %21, %25 : vector<8x1xf32>
    %cst_11 = arith.constant dense<0.000000e+00> : vector<8xf32>
    %27 = vector.multi_reduction <add>, %24, %cst_11 [1] : vector<8x128xf32> to vector<8xf32>
    %28 = vector.shape_cast %27 : vector<8xf32> to vector<8x1xf32>
    %29 = arith.addf %26, %28 : vector<8x1xf32>
    %c0_12 = arith.constant 0 : index
    %c0_13 = arith.constant 0 : index
    %30 = vector.load %arg7[%c0_12, %c0_13] : memref<8x1xf32, #tpu.memory_space<vmem>>, vector<8x1xf32>
    tpu.vector_store %arg7[%c0_12, %c0_13], %29 {strides = array<i32>} : memref<8x1xf32, #tpu.memory_space<vmem>>, vector<8x1xf32>,
    %c0_14 = arith.constant 0 : index
    %c0_15 = arith.constant 0 : index
    %31 = vector.load %arg6[%c0_14, %c0_15] : memref<8x1xf32, #tpu.memory_space<vmem>>, vector<8x1xf32>
    tpu.vector_store %arg6[%c0_14, %c0_15], %19 {strides = array<i32>} : memref<8x1xf32, #tpu.memory_space<vmem>>, vector<8x1xf32>,
    %c0_i32_16 = arith.constant 0 : i32
    %32 = arith.cmpi eq, %arg1, %c0_i32_16 : i32
    %33 = arith.extui %32 : i1 to i32
    %c0_i32_17 = arith.constant 0 : i32
    %34 = arith.cmpi ne, %33, %c0_i32_17 : i32
    scf.if %34 {
      %c0_18 = arith.constant 0 : index
      %c0_19 = arith.constant 0 : index
      %35 = vector.load %arg4[%c0_18, %c0_19] : memref<8x32xf32, #tpu.memory_space<vmem>>, vector<8x32xf32>
      %36 = arith.mulf %5, %35 : vector<8x32xf32>
      %cst_20 = arith.constant dense<0.000000e+00> : vector<8xf32>
      %37 = vector.multi_reduction <add>, %36, %cst_20 [1] : vector<8x32xf32> to vector<8xf32>
      %38 = vector.shape_cast %37 : vector<8xf32> to vector<8x1xf32>
      %c0_21 = arith.constant 0 : index
      %c0_22 = arith.constant 0 : index
      %39 = vector.load %arg6[%c0_21, %c0_22] : memref<8x1xf32, #tpu.memory_space<vmem>>, vector<8x1xf32>
      %c0_23 = arith.constant 0 : index
      %c0_24 = arith.constant 0 : index
      %40 = vector.load %arg7[%c0_23, %c0_24] : memref<8x1xf32, #tpu.memory_space<vmem>>, vector<8x1xf32>
      %41 = math.log %40 : vector<8x1xf32>
      %42 = arith.addf %39, %41 : vector<8x1xf32>
      %43 = arith.subf %42, %38 : vector<8x1xf32>
      %44 = vector.shape_cast %43 : vector<8x1xf32> to vector<1x8x1xf32>
      %cst_25 = arith.constant dense<0.000000e+00> : vector<1xf32>
      %45 = vector.multi_reduction <add>, %44, %cst_25 [1, 2] : vector<1x8x1xf32> to vector<1xf32>
      %46 = vector.shape_cast %45 : vector<1xf32> to vector<1x1x1xf32>
      %47 = vector.extract %46[0, 0, 0] : f32 from vector<1x1x1xf32>
      %48 = vector.broadcast %47 : f32 to vector<1x1x128xf32>
      %c0_26 = arith.constant 0 : index
      %c0_27 = arith.constant 0 : index
      %c0_28 = arith.constant 0 : index
      %49 = vector.load %arg5[%c0_26, %c0_27, %c0_28] : memref<1x1x128xf32, #tpu.memory_space<vmem>>, vector<1x1x128xf32>
      tpu.vector_store %arg5[%c0_26, %c0_27, %c0_28], %48 {strides = array<i32>} : memref<1x1x128xf32, #tpu.memory_space<vmem>>, vector<1x1x128xf32>,
    } else {
    }
    return
  }
  func.func @transform_0(%arg0: i32, %arg1: i32) -> (i32, i32) {
    %c0_i32 = arith.constant 0 : i32
    %c0_i32_0 = arith.constant 0 : i32
    return %arg0, %c0_i32 : i32, i32
  }
  func.func @transform_1(%arg0: i32, %arg1: i32) -> (i32, i32) {
    %c0_i32 = arith.constant 0 : i32
    %c0_i32_0 = arith.constant 0 : i32
    return %arg1, %c0_i32 : i32, i32
  }
  func.func @transform_2(%arg0: i32, %arg1: i32) -> (i32, i32) {
    %c0_i32 = arith.constant 0 : i32
    %c0_i32_0 = arith.constant 0 : i32
    return %arg0, %c0_i32 : i32, i32
  }
  func.func @transform_3(%arg0: i32, %arg1: i32) -> (i32, i32, i32) {
    %c0_i32 = arith.constant 0 : i32
    %c0_i32_0 = arith.constant 0 : i32
    %c0_i32_1 = arith.constant 0 : i32
    return %arg0, %c0_i32, %c0_i32_0 : i32, i32, i32
  }
}

</mosaic_0001>

<llo_original>
// kernel: tpu_custom_call.1
$region0: #{tpu_custom_call.1}
  #allocation0 [shape = 'u32[]', space=smem, size = 0x4, offset = 0x4, fixed_abs, tag = 'smem constant byte address 0x4 - core index']
  #allocation1 [shape = 'u32[144,128]{1,0:T(1,128)}', space=vmem, size = 0x12000, scoped, tag = 'internal scratch']
  #allocation2 [shape = 'f32[8,1]{1,0:T(8,128)}', space=vmem, size = 0x1000, scoped, tag = 'scratch operand']
  #allocation3 [shape = 'f32[8,1]{1,0:T(8,128)}', space=vmem, size = 0x1000, scoped, tag = 'scratch operand']
  %s0 = inlined_call_operand.vmem [shape: f32[8,32], index: 0, kind: input, shape index: {}]
  %s1 = inlined_call_operand.vmem [shape: f32[128,32], index: 1, kind: input, shape index: {}]
  %s2 = inlined_call_operand.vmem [shape: f32[8,32], index: 2, kind: input, shape index: {}]
  %s3 = inlined_call_operand.hbm [shape: f32[1,1,128], index: 3, kind: output, shape index: {}]
  %s4 = sld [smem:[#allocation0]]
  $region30: #{tpu_custom_call.1} parent=0
    _
  %s6 = ssub.s32 1, %s4
  %s7 = scalar_select 0, %s6, %s4
  $region1: #{tpu_custom_call.1} parent=0
    #allocation4 [shape = 'u8[512]{0}', space=vmem, size = 0x400, scoped, tag = 'output window, operand 0, single buffered']
    #allocation5 [shape = 's32[1]{0}', space=sflag, size = 0x4, scoped, tag = 'scoped memory for tpu_custom_call.1']
    %8 = vsyncpa [#allocation5], 0
    // Predicated region
    $region2: #{tpu_custom_call.1} parent=1 // pred_check
      _
    $region3: #{tpu_custom_call.1} parent=1 // pred_check_branch
      %10 = sbr.rel (0) target = $region5
    $region4: #{tpu_custom_call.1} parent=1 // pred_region
      _
    $region5: #{tpu_custom_call.1} parent=1 // pred_fallthru
      _
    // Predicated region
    $region6: #{tpu_custom_call.1} parent=1 // pred_check
      _
    $region7: #{tpu_custom_call.1} parent=1 // pred_check_branch
      %12 = sbr.rel (0) target = $region9
    $region8: #{tpu_custom_call.1} parent=1 // pred_region
      _
    $region9: #{tpu_custom_call.1} parent=1 // pred_fallthru
      _
    // Predicated region
    $region10: #{tpu_custom_call.1} parent=1 // pred_check
      _
    $region11: #{tpu_custom_call.1} parent=1 // pred_check_branch
      %14 = sbr.rel (0) target = $region13
    $region12: #{tpu_custom_call.1} parent=1 // pred_region
      _
    $region13: #{tpu_custom_call.1} parent=1 // pred_fallthru
      _
    %p15 = scmp.eq.s32.totalorder 0, 0
    // Predicated region
    $region14: #{tpu_custom_call.1} parent=1 // pred_check
      %p16 = pneg %p15
    $region15: #{tpu_custom_call.1} parent=1 // pred_check_branch
      %18 = sbr.rel (%p16) target = $region17
    $region16: #{tpu_custom_call.1} parent=1 // pred_region
      %vm19 = vcmask 7168
      %20 = vst.msk [vmem:[#allocation2] sm:$0xff] %vm19, -1e+30
      %21 = vst.msk [vmem:[#allocation3] sm:$0xff] %vm19, 0.0
    $region17: #{tpu_custom_call.1} parent=1 // pred_fallthru
      _
    %v22 = vld [vmem:[%s0] sm:$0xff]
    %v23 = vmul.f32 %v22, 10.0
    %v24 = vld [vmem:[%s1] sm:$0xff]
    %v25 = vld [vmem:[%s1 + $0x8] sm:$0xff]
    %v26 = vld [vmem:[%s1 + $0x10] sm:$0xff]
    %v27 = vld [vmem:[%s1 + $0x18] sm:$0xff]
    %v28 = vld [vmem:[%s1 + $0x20] sm:$0xff]
    %v29 = vld [vmem:[%s1 + $0x28] sm:$0xff]
    %v30 = vld [vmem:[%s1 + $0x30] sm:$0xff]
    %v31 = vld [vmem:[%s1 + $0x38] sm:$0xff]
    %v32 = vld [vmem:[%s1 + $0x40] sm:$0xff]
    %v33 = vld [vmem:[%s1 + $0x48] sm:$0xff]
    %v34 = vld [vmem:[%s1 + $0x50] sm:$0xff]
    %v35 = vld [vmem:[%s1 + $0x58] sm:$0xff]
    %v36 = vld [vmem:[%s1 + $0x60] sm:$0xff]
    %v37 = vld [vmem:[%s1 + $0x68] sm:$0xff]
    %v38 = vld [vmem:[%s1 + $0x70] sm:$0xff]
    %v39 = vld [vmem:[%s1 + $0x78] sm:$0xff]
    %vm40 = vcmask 261120
    %v42 = vsel %vm40, %v23, 0
    %v45 = vsel %vm40, %v24, 0
    %v48 = vsel %vm40, %v25, 0
    %v51 = vsel %vm40, %v26, 0
    %v54 = vsel %vm40, %v27, 0
    %v57 = vsel %vm40, %v28, 0
    %v60 = vsel %vm40, %v29, 0
    %v63 = vsel %vm40, %v30, 0
    %v66 = vsel %vm40, %v31, 0
    %v69 = vsel %vm40, %v32, 0
    %v72 = vsel %vm40, %v33, 0
    %v75 = vsel %vm40, %v34, 0
    %v78 = vsel %vm40, %v35, 0
    %v81 = vsel %vm40, %v36, 0
    %v84 = vsel %vm40, %v37, 0
    %v87 = vsel %vm40, %v38, 0
    %v90 = vsel %vm40, %v39, 0
    %92 = vmatprep.subr.mxu0 0.0
    %93 = vmatpush1.xpose.msra.mxu0 %v45
    %94 = vmatprep.subr.mxu0 0.0
    %95 = vmatpush1.xpose.msra.mxu0 %v48
    %96 = vmatprep.subr.mxu0 0.0
    %97 = vmatpush1.xpose.msra.mxu0 %v51
    %98 = vmatprep.subr.mxu0 0.0
    %99 = vmatpush1.xpose.msra.mxu0 %v54
    %100 = vmatprep.subr.mxu0 0.0
    %101 = vmatpush1.xpose.msra.mxu0 %v57
    %102 = vmatprep.subr.mxu0 0.0
    %103 = vmatpush1.xpose.msra.mxu0 %v60
    %104 = vmatprep.subr.mxu0 0.0
    %105 = vmatpush1.xpose.msra.mxu0 %v63
    %106 = vmatprep.subr.mxu0 0.0
    %107 = vmatpush1.xpose.msra.mxu0 %v66
    %108 = vmatprep.subr.mxu0 0.0
    %109 = vmatpush1.xpose.msra.mxu0 %v69
    %110 = vmatprep.subr.mxu0 0.0
    %111 = vmatpush1.xpose.msra.mxu0 %v72
    %112 = vmatprep.subr.mxu0 0.0
    %113 = vmatpush1.xpose.msra.mxu0 %v75
    %114 = vmatprep.subr.mxu0 0.0
    %115 = vmatpush1.xpose.msra.mxu0 %v78
    %116 = vmatprep.subr.mxu0 0.0
    %117 = vmatpush1.xpose.msra.mxu0 %v81
    %118 = vmatprep.subr.mxu0 0.0
    %119 = vmatpush1.xpose.msra.mxu0 %v84
    %120 = vmatprep.subr.mxu0 0.0
    %121 = vmatpush1.xpose.msra.mxu0 %v87
    %122 = vmatprep.subr.mxu0 0.0
    %123 = vmatpush1.xpose.msra.mxu0 %v90
    %124 = vmatprep.subr.mxu0 0.0
    %125 = vmatpush1.xpose.msra.mxu0 0.0
    %126 = vmatprep.subr.mxu0 0.0
    %127 = vmatpush1.xpose.msra.mxu0 0.0
    %128 = vmatprep.subr.mxu0 0.0
    %129 = vmatpush1.xpose.msra.mxu0 0.0
    %130 = vmatprep.subr.mxu0 0.0
    %131 = vmatpush1.xpose.msra.mxu0 0.0
    %132 = vmatprep.subr.mxu0 0.0
    %133 = vmatpush1.xpose.msra.mxu0 0.0
    %134 = vmatprep.subr.mxu0 0.0
    %135 = vmatpush1.xpose.msra.mxu0 0.0
    %136 = vmatprep.subr.mxu0 0.0
    %137 = vmatpush1.xpose.msra.mxu0 0.0
    %138 = vmatprep.subr.mxu0 0.0
    %139 = vmatpush1.xpose.msra.mxu0 0.0
    %140 = vmatprep.subr.mxu0 0.0
    %141 = vmatpush1.xpose.msra.mxu0 0.0
    %142 = vmatprep.subr.mxu0 0.0
    %143 = vmatpush1.xpose.msra.mxu0 0.0
    %144 = vmatprep.subr.mxu0 0.0
    %145 = vmatpush1.xpose.msra.mxu0 0.0
    %146 = vmatprep.subr.mxu0 0.0
    %147 = vmatpush1.xpose.msra.mxu0 0.0
    %148 = vmatprep.subr.mxu0 0.0
    %149 = vmatpush1.xpose.msra.mxu0 0.0
    %150 = vmatprep.subr.mxu0 0.0
    %151 = vmatpush1.xpose.msra.mxu0 0.0
    %152 = vmatprep.subr.mxu0 0.0
    %153 = vmatpush1.xpose.msra.mxu0 0.0
    %154 = vmatprep.subr.mxu0 0.0
    %155 = vmatpush1.xpose.msra.mxu0 0.0
    %156 = vmatprep.mubr.f32.mxu0 0.0
    %157 = vmatmul.mubr.f32.gmra.mrb[0].mxu0 %v42
    %v158 = vpop.f32.mrb[0].mxu0
    %v159 = vadd.f32 0.0, %v158
    %v160 = vpop.f32.mrb[0].mxu0
    %161 = vdwg.mxu0
    %v162 = vlaneseq
    %v163 = vand.u32 %v162, 127
    %s164 = smul.u32 0, 128
    %v165 = vstv %s164
    %v166 = vadd.s32 %v163, %v165
    %vm167 = vcmp.lt.s32.totalorder %v166, 8
    %v168 = vsel %vm167, %v159, -1e+30
    %v169 = vld [vmem:[#allocation2] sm:$0xff]
    %170 = vmax.xlane.f32.xlu0 %v168
    %v171 = vpop.xlane.xlu0 %170
    %v172 = vmax.f32 %v169, %v171
    %v173 = vsub.f32 %v169, %v172
    %v174 = vmul.f32 %v173, 1.442695
    %v175 = vpow.pop %v174
    %177 = vset.pattern.permute.xlu0 0
    %178 = vperm.xlu0 %177, %v172
    %v179 = vpop.permute.xlu0 %178
    %v181 = vsub.f32 %v168, %v179
    %v182 = vmul.f32 %v181, 1.442695
    %v183 = vpow.pop %v182
    %v184 = vld [vmem:[#allocation3] sm:$0xff]
    %v185 = vmul.f32 %v175, %v184
    %186 = vadd.xlane.f32.xlu0 %v183
    %v187 = vpop.xlane.xlu0 %186
    %v188 = vadd.f32 %v185, %v187
    %vm189 = vcmask 7168
    %190 = vst.msk [vmem:[#allocation3] sm:$0xff] %vm189, %v188
    %191 = vst.msk [vmem:[#allocation2] sm:$0xff] %vm189, %v172
    // Predicated region
    $region18: #{tpu_custom_call.1} parent=1 // pred_check
      %p192 = pneg %p15
    $region19: #{tpu_custom_call.1} parent=1 // pred_check_branch
      %194 = sbr.rel (%p192) target = $region21
    $region20: #{tpu_custom_call.1} parent=1 // pred_region
      %v195 = vld [vmem:[%s2] sm:$0xff]
      %v196 = vmul.f32 %v23, %v195
      %v197 = vsel %vm40, %v196, 0.0
      %198 = vadd.xlane.f32.xlu0 %v197
      %v199 = vpop.xlane.xlu0 %198
      %v200 = vld [vmem:[#allocation2] sm:$0xff]
      %v201 = vld [vmem:[#allocation3] sm:$0xff]
      %v202 = vlog2.pop %v201
      %v203 = vmul.f32 %v202, 0.6931472
      %v204 = vadd.f32 %v200, %v203
      %v205 = vsub.f32 %v204, %v199
      %v206 = vsel %vm189, %v205, 0.0
      %207 = vadd.xlane.f32.xlu0 %v206
      %v208 = vpop.xlane.xlu0 %207
      %v209 = vrot.slane %v208, 4
      %v210 = vadd.f32 %v208, %v209
      %v211 = vrot.slane %v210, 2
      %v212 = vadd.f32 %v210, %v211
      %v213 = vrot.slane %v212, 1
      %v214 = vadd.f32 %v212, %v213
      %s215 = vtos %v214
      %v216 = vstv %s215
      %217 = vst [vmem:[#allocation4] sm:$0x1] %v216
    $region21: #{tpu_custom_call.1} parent=1 // pred_fallthru
      _
    // Predicated region
    $region22: #{tpu_custom_call.1} parent=1 // pred_check
      _
    $region23: #{tpu_custom_call.1} parent=1 // pred_check_branch
      %219 = sbr.rel (0) target = $region25
    $region24: #{tpu_custom_call.1} parent=1 // pred_region
      %s221 = ssub.s32 16, 16
      %222 = vsyncadd [#allocation5], %s221
      %s224 = sshll.u32 [#allocation4], 4
      %s225 = int_to_ptr.vmem [resolvable:$true] %s224
      %227 = dma.vmem_to_hbm [thread:$0]  %s225, 16, %s3, [#allocation5]
    $region25: #{tpu_custom_call.1} parent=1 // pred_fallthru
      _
    // Predicated region
    $region26: #{tpu_custom_call.1} parent=1 // pred_check
      _
    $region27: #{tpu_custom_call.1} parent=1 // pred_check_branch
      %229 = sbr.rel (0) target = $region29
    $region28: #{tpu_custom_call.1} parent=1 // pred_region
      %230 = dma.done [#allocation5], 16
    $region29: #{tpu_custom_call.1} parent=1 // pred_fallthru
      _
    %231 = vsyncpa [#allocation5], 1

</llo_original>
